<compile_context>
chip_gen: v5e
topology: v5e:2x2
jax: 0.10.0
libtpu: 0.0.40
codegen_flags: <defaults>
</compile_context>

<pallas_src>
import numpy as np
import jax
import jax.numpy as jnp
from jax import lax
from jax.experimental import pallas as pl
from jax.experimental.pallas import tpu as pltpu


# ----------------------------- glue helpers ---------------------------------

def _adaptive_pool_matrix(in_size, out_size):
    """(out_size, in_size) row-stochastic matrix implementing AdaptiveAvgPool1d."""
    P = np.zeros((out_size, in_size), np.float32)
    for i in range(out_size):
        s = (i * in_size) // out_size
        e = -((-(i + 1) * in_size) // out_size)  # ceil
        P[i, s:e] = 1.0 / (e - s)
    return P


def _bilinear_matrix(out_size, in_size):
    """(out_size, in_size) matrix for bilinear interp with align_corners=True."""
    M = np.zeros((out_size, in_size), np.float32)
    if in_size == 1:
        M[:, 0] = 1.0
        return M
    scale = (in_size - 1) / (out_size - 1)
    for o in range(out_size):
        src = o * scale
        i0 = min(int(np.floor(src)), in_size - 1)
        i1 = min(i0 + 1, in_size - 1)
        frac = src - i0
        M[o, i0] += 1.0 - frac
        M[o, i1] += frac
    return M


def _fold_bn(gamma, beta, mean, var, eps=1e-5):
    scale = gamma / jnp.sqrt(var + eps)
    bias = beta - mean * scale
    return scale, bias


# ----------------------------- fused Pallas kernel ---------------------------

_PAD = 128  # lane-aligned halo width (must be >= W + 1)


def _make_fused_kernel(H, W, C, Co, S, Bp, Cc):
    HW = H * W
    PAD = _PAD
    assert PAD >= W + 1

    def kernel(x_ref, poolT_ref, w1_ref, b1_ref, mask_ref, upT_ref,
               w3_ref, b3_ref, o_ref, ext_ref):
        # x_ref:    (C, HW)  bf16      poolT_ref: (HW, Bp)   bf16
        # w1_ref:   (S*Co, C) bf16     b1_ref:    (S*Co, 1)  f32
        # mask_ref: (S*Co, Bp) f32     upT_ref:   (Bp, HW)   bf16
        # w3_ref:   (Co, 9*Cc) bf16    b3_ref:    (Co, 1)    f32
        # o_ref:    (Co, HW)  f32      ext_ref:   (Cc, HW + 2*PAD) bf16 scratch

        # zero only the halo columns (interior is fully overwritten below);
        # done every step so it is megacore-safe (scratch is per-core).
        ext_ref[:, :PAD] = jnp.zeros((Cc, PAD), jnp.bfloat16)
        ext_ref[:, PAD + HW:] = jnp.zeros((Cc, PAD), jnp.bfloat16)

        xb = x_ref[...]                                                         # (C, HW) bf16

        # --- all pyramid stages fused: pool -> 1x1 conv(+BN) -> ReLU -> upsample
        pooled = jnp.dot(xb, poolT_ref[...],
                         preferred_element_type=jnp.float32)                    # (C, Bp)
        y = jnp.dot(w1_ref[...], pooled.astype(jnp.bfloat16),
                    preferred_element_type=jnp.float32)                         # (S*Co, Bp)
        y = jnp.maximum(y + b1_ref[...], 0.0) * mask_ref[...]                   # bias+ReLU, keep diag blocks
        ups = jnp.dot(y.astype(jnp.bfloat16), upT_ref[...],
                      preferred_element_type=jnp.float32)                       # (S*Co, HW)

        # --- concatenated pyramid [x, stage0..stageS-1] written directly into
        #     the lane-aligned interior of the padded scratch (no concat temp)
        ext_ref[:C, PAD:PAD + HW] = xb
        ext_ref[C:, PAD:PAD + HW] = ups.astype(jnp.bfloat16)

        # --- 3x3 conv: taps are static lane-window slices of the padded scratch
        col = lax.broadcasted_iota(jnp.int32, (1, HW), 1) % W                   # output column index
        left_ok = col >= 1
        right_ok = col <= W - 2

        def tap(ky, kx):
            start = PAD + (ky - 1) * W + (kx - 1)
            t = ext_ref[:, start:start + HW]                                    # (Cc, HW) bf16
            if kx == 0:        # left neighbour invalid at column 0
                t = jnp.where(left_ok, t, jnp.zeros_like(t))
            elif kx == 2:      # right neighbour invalid at column W-1
                t = jnp.where(right_ok, t, jnp.zeros_like(t))
            return t

        if 9 * Cc <= 256:
            # tiny contraction: pack all 9 taps into one K=9*Cc MXU matmul
            stack = jnp.concatenate([tap(ky, kx) for ky in range(3) for kx in range(3)],
                                    axis=0)                                     # (9*Cc, HW)
            out = jnp.dot(w3_ref[...], stack, preferred_element_type=jnp.float32)
        else:
            # large Cc: per-tap accumulation (K=Cc already fills MXU depth),
            # avoids materializing the 9x im2col stack in VMEM.
            out = jnp.zeros((Co, HW), jnp.float32)
            for ky in range(3):
                for kx in range(3):
                    tix = ky * 3 + kx
                    out = out + jnp.dot(w3_ref[:, tix * Cc:(tix + 1) * Cc], tap(ky, kx),
                                        preferred_element_type=jnp.float32)

        out = jnp.maximum(out + b3_ref[...], 0.0)                               # BN bias + ReLU
        o_ref[...] = out.astype(o_ref.dtype)

    return kernel


# ----------------------------- module wrapper --------------------------------

class PSPModulePallas:
    def __init__(self, in_channels, bin_sizes, H, W, key):
        self.C = C = in_channels
        self.bins = tuple(bin_sizes)
        self.S = S = len(self.bins)
        self.Co = Co = in_channels // S
        self.H, self.W = H, W
        self.HW = HW = H * W
        self.Cc = Cc = C + Co * S

        bbs = [b * b for b in self.bins]
        offs = np.concatenate([[0], np.cumsum(bbs)]).astype(int)
        self.offs = offs
        self.Bsum = Bsum = int(offs[-1])
        self.Bp = Bp = int(-(-Bsum // 64) * 64)        # pad pooled axis to 64-lane multiple

        poolT = np.zeros((HW, Bp), np.float32)         # stacked pooling (transposed), zero-padded
        upT = np.zeros((Bp, HW), np.float32)           # stacked bilinear upsample (transposed)
        w1_stack = np.zeros((S * Co, C), np.float32)   # BN-scale-folded 1x1 conv weights
        b1_all = np.zeros((S * Co, 1), np.float32)     # BN biases
        blkmask = np.zeros((S * Co, Bp), np.float32)   # block-diagonal stage mask

        for s, b in enumerate(self.bins):
            k = jax.random.fold_in(key, s)
            kw, kg, kb, km, kv = jax.random.split(k, 5)
            w1 = 0.1 * jax.random.normal(kw, (Co, C), jnp.float32)
            gamma = 1.0 + 0.1 * jax.random.uniform(kg, (Co,), jnp.float32)
            beta = 0.05 * jax.random.normal(kb, (Co,), jnp.float32)
            mean = 0.1 * jax.random.normal(km, (Co,), jnp.float32)
            var = 1.0 + 0.1 * jax.random.uniform(kv, (Co,), jnp.float32)
            scale, bias = _fold_bn(gamma, beta, mean, var)

            P2 = np.kron(_adaptive_pool_matrix(H, b), _adaptive_pool_matrix(W, b))  # (bb, HW)
            U = np.kron(_bilinear_matrix(H, b), _bilinear_matrix(W, b))             # (HW, bb)
            o0, o1 = int(offs[s]), int(offs[s + 1])
            poolT[:, o0:o1] = P2.T
            upT[o0:o1, :] = U.T
            w1_stack[s * Co:(s + 1) * Co, :] = np.asarray(w1) * np.asarray(scale)[:, None]
            b1_all[s * Co:(s + 1) * Co, 0] = np.asarray(bias)
            blkmask[s * Co:(s + 1) * Co, o0:o1] = 1.0

        # bottleneck 3x3 conv + BN (scale folded into weights)
        kbn = jax.random.fold_in(key, 1000)
        kw, kg, kb, km, kv = jax.random.split(kbn, 5)
        w3 = 0.05 * jax.random.normal(kw, (Co, Cc, 3, 3), jnp.float32)   # OIHW
        gamma = 1.0 + 0.1 * jax.random.uniform(kg, (Co,), jnp.float32)
        beta = 0.05 * jax.random.normal(kb, (Co,), jnp.float32)
        mean = 0.1 * jax.random.normal(km, (Co,), jnp.float32)
        var = 1.0 + 0.1 * jax.random.uniform(kv, (Co,), jnp.float32)
        scale_b, bias_b = _fold_bn(gamma, beta, mean, var)

        self.w3_folded = (w3 * scale_b[:, None, None, None]).astype(jnp.bfloat16)  # (Co, Cc, 3, 3)
        # pack taps along the contraction axis: column = (ky*3 + kx)*Cc + ci
        self.w3_pack = jnp.transpose(self.w3_folded, (0, 2, 3, 1)).reshape(Co, 9 * Cc)
        self.b3 = bias_b.astype(jnp.float32).reshape(Co, 1)

        self.poolT = jnp.asarray(poolT).astype(jnp.bfloat16)
        self.upT = jnp.asarray(upT).astype(jnp.bfloat16)
        self.w1_stack = jnp.asarray(w1_stack).astype(jnp.bfloat16)
        self.b1_all = jnp.asarray(b1_all, jnp.float32)
        self.blkmask = jnp.asarray(blkmask, jnp.float32)

    def __call__(self, x_nchw):
        N = x_nchw.shape[0]
        H, W, C, Co = self.H, self.W, self.C, self.Co
        S, Cc, HW, Bp = self.S, self.Cc, self.HW, self.Bp

        # channels-first, spatial flattened onto lanes; bf16 halves DMA + VMEM
        x = x_nchw.reshape(N, C, HW).astype(jnp.bfloat16)

        kernel = _make_fused_kernel(H, W, C, Co, S, Bp, Cc)

        def _const(shape):
            nd = len(shape)
            return pl.BlockSpec(shape, lambda n: (0,) * nd,
                                pipeline_mode=pl.Buffered(1))   # constant operand: single buffer

        flops = N * 2 * (C * HW * Bp + S * Co * C * Bp + S * Co * Bp * HW + Co * 9 * Cc * HW)
        bytes_accessed = (N * C * HW * 2 + N * Co * HW * 4
                          + HW * Bp * 2 + S * Co * C * 2 + S * Co * 4
                          + S * Co * Bp * 4 + Bp * HW * 2 + Co * 9 * Cc * 2 + Co * 4)
        cost = pl.CostEstimate(flops=int(flops), transcendentals=0,
                               bytes_accessed=int(bytes_accessed))

        out = pl.pallas_call(
            kernel,
            out_shape=jax.ShapeDtypeStruct((N, Co, HW), jnp.float32),
            grid=(N,),
            in_specs=[
                pl.BlockSpec((None, C, HW), lambda n: (n, 0, 0)),
                _const((HW, Bp)),
                _const((S * Co, C)),
                _const((S * Co, 1)),
                _const((S * Co, Bp)),
                _const((Bp, HW)),
                _const((Co, 9 * Cc)),
                _const((Co, 1)),
            ],
            out_specs=pl.BlockSpec((None, Co, HW), lambda n: (n, 0, 0)),
            scratch_shapes=[pltpu.VMEM((Cc, HW + 2 * _PAD), jnp.bfloat16)],
            compiler_params=pltpu.CompilerParams(
                dimension_semantics=("parallel",),
                vmem_limit_bytes=48 * 1024 * 1024,
            ),
            cost_estimate=cost,
        )(x, self.poolT, self.w1_stack, self.b1_all, self.blkmask,
          self.upT, self.w3_pack, self.b3)

        return out.reshape(N, Co, H, W)   # already NCHW: no transpose needed

    # pure-JAX reference (independent structure, same bf16-rounded operands)
    def reference(self, x_nchw):
        N = x_nchw.shape[0]
        H, W, C, Co = self.H, self.W, self.C, self.Co
        S, Cc, HW = self.S, self.Cc, self.HW

        xb = x_nchw.reshape(N, C, HW).astype(jnp.bfloat16)
        feats = [xb.astype(jnp.float32)]
        for s in range(S):
            o0, o1 = int(self.offs[s]), int(self.offs[s + 1])
            poolT_s = self.poolT[:, o0:o1]
            upT_s = self.upT[o0:o1, :]
            w1_s = self.w1_stack[s * Co:(s + 1) * Co, :]
            b1_s = self.b1_all[s * Co:(s + 1) * Co, :]
            pooled = jnp.einsum('ncp,pq->ncq', xb, poolT_s,
                                preferred_element_type=jnp.float32)
            y = jnp.einsum('oc,ncq->noq', w1_s, pooled.astype(jnp.bfloat16),
                           preferred_element_type=jnp.float32)
            y = jnp.maximum(y + b1_s[None, :, :], 0.0)
            up = jnp.einsum('noq,qp->nop', y.astype(jnp.bfloat16), upT_s,
                            preferred_element_type=jnp.float32)
            feats.append(up)
        pyr = jnp.concatenate(feats, axis=1).reshape(N, Cc, H, W).astype(jnp.bfloat16)
        out = lax.conv_general_dilated(
            pyr, self.w3_folded, window_strides=(1, 1), padding='SAME',
            dimension_numbers=('NCHW', 'OIHW', 'NCHW'),
            preferred_element_type=jnp.float32)
        out = jnp.maximum(out + self.b3.reshape(1, Co, 1, 1), 0.0)
        return out


if __name__ == "__main__":
    key = jax.random.PRNGKey(0)
    k_x, k_p = jax.random.split(key)

    N, C_in, H, W = 2, 8, 16, 16
    bins = (1, 2, 3, 6)                     # classic PSP bin sizes
    x = jax.random.normal(k_x, (N, C_in, H, W), dtype=jnp.float32)

    mod = PSPModulePallas(C_in, bins, H, W, k_p)
    out = jax.block_until_ready(mod(x))

    ref = mod.reference(x)
    assert out.shape == (N, C_in // len(bins), H, W), out.shape
    err = float(jnp.max(jnp.abs(out - ref)))
    if err > 5e-3:
        raise AssertionError(f"mismatch vs reference: max abs err {err}")

    print("KERNEL_OK")
</pallas_src>

<mosaic_0001>
module attributes {stable_mosaic.version = 11 : i64} {
  func.func @kernel(%arg0: i32, %arg1: memref<1x8x256xbf16, #tpu.memory_space<vmem>>, %arg2: memref<256x64xbf16, #tpu.memory_space<vmem>>, %arg3: memref<8x8xbf16, #tpu.memory_space<vmem>>, %arg4: memref<8x1xf32, #tpu.memory_space<vmem>>, %arg5: memref<8x64xf32, #tpu.memory_space<vmem>>, %arg6: memref<64x256xbf16, #tpu.memory_space<vmem>>, %arg7: memref<2x144xbf16, #tpu.memory_space<vmem>>, %arg8: memref<2x1xf32, #tpu.memory_space<vmem>>, %arg9: memref<1x2x256xf32, #tpu.memory_space<vmem>>, %arg10: memref<16x512xbf16, #tpu.memory_space<vmem>>) attributes {dimension_semantics = [#tpu.dimension_semantics<parallel>], iteration_bounds = array<i64: 2>, scalar_prefetch = 0 : i64, scratch_operands = 1 : i64, tpu.core_type = #tpu.core_type<tc>, window_params = [{transform_indices = @transform_0, window_bounds = array<i64: 1, 8, 256>}, {pipeline_mode = #tpu.pipeline_mode<synchronous>, transform_indices = @transform_1, window_bounds = array<i64: 256, 64>}, {pipeline_mode = #tpu.pipeline_mode<synchronous>, transform_indices = @transform_2, window_bounds = array<i64: 8, 8>}, {pipeline_mode = #tpu.pipeline_mode<synchronous>, transform_indices = @transform_3, window_bounds = array<i64: 8, 1>}, {pipeline_mode = #tpu.pipeline_mode<synchronous>, transform_indices = @transform_4, window_bounds = array<i64: 8, 64>}, {pipeline_mode = #tpu.pipeline_mode<synchronous>, transform_indices = @transform_5, window_bounds = array<i64: 64, 256>}, {pipeline_mode = #tpu.pipeline_mode<synchronous>, transform_indices = @transform_6, window_bounds = array<i64: 2, 144>}, {pipeline_mode = #tpu.pipeline_mode<synchronous>, transform_indices = @transform_7, window_bounds = array<i64: 2, 1>}, {transform_indices = @transform_8, window_bounds = array<i64: 1, 2, 256>}]} {
    %cst = arith.constant 0.000000e+00 : bf16
    %0 = vector.broadcast %cst : bf16 to vector<16x128xbf16>
    %c0 = arith.constant 0 : index
    %c0_0 = arith.constant 0 : index
    %1 = vector.load %arg10[%c0, %c0_0] : memref<16x512xbf16, #tpu.memory_space<vmem>>, vector<16x128xbf16>
    tpu.vector_store %arg10[%c0, %c0_0], %0 {strides = array<i32>} : memref<16x512xbf16, #tpu.memory_space<vmem>>, vector<16x128xbf16>,
    %cst_1 = arith.constant 0.000000e+00 : bf16
    %2 = vector.broadcast %cst_1 : bf16 to vector<16x128xbf16>
    %c0_2 = arith.constant 0 : index
    %c384 = arith.constant 384 : index
    %3 = vector.load %arg10[%c0_2, %c384] : memref<16x512xbf16, #tpu.memory_space<vmem>>, vector<16x128xbf16>
    tpu.vector_store %arg10[%c0_2, %c384], %2 {strides = array<i32>} : memref<16x512xbf16, #tpu.memory_space<vmem>>, vector<16x128xbf16>,
    %c0_3 = arith.constant 0 : index
    %c0_4 = arith.constant 0 : index
    %c0_5 = arith.constant 0 : index
    %4 = vector.load %arg1[%c0_3, %c0_4, %c0_5] : memref<1x8x256xbf16, #tpu.memory_space<vmem>>, vector<1x8x256xbf16>
    %5 = vector.shape_cast %4 : vector<1x8x256xbf16> to vector<8x256xbf16>
    %c0_6 = arith.constant 0 : index
    %c0_7 = arith.constant 0 : index
    %6 = vector.load %arg2[%c0_6, %c0_7] : memref<256x64xbf16, #tpu.memory_space<vmem>>, vector<256x64xbf16>
    %cst_8 = arith.constant dense<0.000000e+00> : vector<8x64xf32>
    %7 = tpu.matmul %5, %6, %cst_8 {dimension_numbers = #tpu.dot_dimension_numbers<[1], [0], [0], [1], [0, 0, 1, 1], [], []>} : vector<8x256xbf16>, vector<256x64xbf16>, vector<8x64xf32> -> vector<8x64xf32>
    %c0_9 = arith.constant 0 : index
    %c0_10 = arith.constant 0 : index
    %8 = vector.load %arg3[%c0_9, %c0_10] : memref<8x8xbf16, #tpu.memory_space<vmem>>, vector<8x8xbf16>
    %9 = arith.truncf %7 : vector<8x64xf32> to vector<8x64xbf16>
    %cst_11 = arith.constant dense<0.000000e+00> : vector<8x64xf32>
    %10 = tpu.matmul %8, %9, %cst_11 {dimension_numbers = #tpu.dot_dimension_numbers<[1], [0], [0], [1], [0, 0, 1, 1], [], []>} : vector<8x8xbf16>, vector<8x64xbf16>, vector<8x64xf32> -> vector<8x64xf32>
    %c0_12 = arith.constant 0 : index
    %c0_13 = arith.constant 0 : index
    %11 = vector.load %arg4[%c0_12, %c0_13] : memref<8x1xf32, #tpu.memory_space<vmem>>, vector<8x1xf32>
    %12 = vector.broadcast %11 : vector<8x1xf32> to vector<8x64xf32>
    %13 = arith.addf %10, %12 : vector<8x64xf32>
    %cst_14 = arith.constant 0.000000e+00 : f32
    %14 = vector.broadcast %cst_14 : f32 to vector<8x64xf32>
    %15 = arith.maximumf %13, %14 : vector<8x64xf32>
    %c0_15 = arith.constant 0 : index
    %c0_16 = arith.constant 0 : index
    %16 = vector.load %arg5[%c0_15, %c0_16] : memref<8x64xf32, #tpu.memory_space<vmem>>, vector<8x64xf32>
    %17 = arith.mulf %15, %16 : vector<8x64xf32>
    %18 = arith.truncf %17 : vector<8x64xf32> to vector<8x64xbf16>
    %c0_17 = arith.constant 0 : index
    %c0_18 = arith.constant 0 : index
    %19 = vector.load %arg6[%c0_17, %c0_18] : memref<64x256xbf16, #tpu.memory_space<vmem>>, vector<64x256xbf16>
    %cst_19 = arith.constant dense<0.000000e+00> : vector<8x256xf32>
    %20 = tpu.matmul %18, %19, %cst_19 {dimension_numbers = #tpu.dot_dimension_numbers<[1], [0], [0], [1], [0, 0, 1, 1], [], []>} : vector<8x64xbf16>, vector<64x256xbf16>, vector<8x256xf32> -> vector<8x256xf32>
    %c0_20 = arith.constant 0 : index
    %c128 = arith.constant 128 : index
    %21 = vector.load %arg10[%c0_20, %c128] : memref<16x512xbf16, #tpu.memory_space<vmem>>, vector<8x256xbf16>
    tpu.vector_store %arg10[%c0_20, %c128], %5 {strides = array<i32>} : memref<16x512xbf16, #tpu.memory_space<vmem>>, vector<8x256xbf16>,
    %22 = arith.truncf %20 : vector<8x256xf32> to vector<8x256xbf16>
    %c8 = arith.constant 8 : index
    %c128_21 = arith.constant 128 : index
    %23 = vector.load %arg10[%c8, %c128_21] : memref<16x512xbf16, #tpu.memory_space<vmem>>, vector<8x256xbf16>
    tpu.vector_store %arg10[%c8, %c128_21], %22 {strides = array<i32>} : memref<16x512xbf16, #tpu.memory_space<vmem>>, vector<8x256xbf16>,
    %24 = tpu.iota {dimensions = array<i32: 1>} : vector<1x256xi32>
    %c16_i32 = arith.constant 16 : i32
    %c0_i32 = arith.constant 0 : i32
    %25 = arith.cmpi eq, %c16_i32, %c0_i32 : i32
    %c1_i32 = arith.constant 1 : i32
    %26 = arith.select %25, %c1_i32, %c16_i32 : i32
    %27 = vector.broadcast %26 : i32 to vector<1x256xi32>
    %28 = arith.remsi %24, %27 : vector<1x256xi32>
    %c0_i32_22 = arith.constant 0 : i32
    %29 = vector.broadcast %c0_i32_22 : i32 to vector<1x256xi32>
    %30 = arith.cmpi ne, %28, %29 : vector<1x256xi32>
    %c0_i32_23 = arith.constant 0 : i32
    %31 = vector.broadcast %c0_i32_23 : i32 to vector<1x256xi32>
    %32 = arith.cmpi slt, %28, %31 : vector<1x256xi32>
    %c0_i32_24 = arith.constant 0 : i32
    %33 = arith.cmpi slt, %26, %c0_i32_24 : i32
    %34 = vector.broadcast %33 : i1 to vector<1x256xi1>
    %35 = vector.broadcast %34 : vector<1x256xi1> to vector<1x256xi1>
    %36 = arith.xori %32, %35 : vector<1x256xi1>
    %37 = arith.andi %36, %30 : vector<1x256xi1>
    %38 = vector.broadcast %26 : i32 to vector<1x256xi32>
    %39 = arith.addi %28, %38 : vector<1x256xi32>
    %40 = arith.select %37, %39, %28 : vector<1x256xi1>, vector<1x256xi32>
    %c1_i32_25 = arith.constant 1 : i32
    %41 = vector.broadcast %c1_i32_25 : i32 to vector<1x256xi32>
    %42 = arith.cmpi sge, %40, %41 : vector<1x256xi32>
    %c14_i32 = arith.constant 14 : i32
    %43 = vector.broadcast %c14_i32 : i32 to vector<1x256xi32>
    %44 = arith.cmpi sle, %40, %43 : vector<1x256xi32>
    %c0_26 = arith.constant 0 : index
    %c111 = arith.constant 111 : index
    %45 = vector.load %arg10[%c0_26, %c111] : memref<16x512xbf16, #tpu.memory_space<vmem>>, vector<16x256xbf16>
    %cst_27 = arith.constant 0.000000e+00 : bf16
    %46 = vector.broadcast %cst_27 : bf16 to vector<16x256xbf16>
    %47 = vector.shape_cast %42 : vector<1x256xi1> to vector<1x256xi1>
    %48 = vector.broadcast %47 : vector<1x256xi1> to vector<16x256xi1>
    %49 = arith.select %48, %45, %46 : vector<16x256xi1>, vector<16x256xbf16>
    %c0_28 = arith.constant 0 : index
    %c112 = arith.constant 112 : index
    %50 = vector.load %arg10[%c0_28, %c112] : memref<16x512xbf16, #tpu.memory_space<vmem>>, vector<16x256xbf16>
    %c0_29 = arith.constant 0 : index
    %c113 = arith.constant 113 : index
    %51 = vector.load %arg10[%c0_29, %c113] : memref<16x512xbf16, #tpu.memory_space<vmem>>, vector<16x256xbf16>
    %cst_30 = arith.constant 0.000000e+00 : bf16
    %52 = vector.broadcast %cst_30 : bf16 to vector<16x256xbf16>
    %53 = vector.shape_cast %44 : vector<1x256xi1> to vector<1x256xi1>
    %54 = vector.broadcast %53 : vector<1x256xi1> to vector<16x256xi1>
    %55 = arith.select %54, %51, %52 : vector<16x256xi1>, vector<16x256xbf16>
    %c0_31 = arith.constant 0 : index
    %c127 = arith.constant 127 : index
    %56 = vector.load %arg10[%c0_31, %c127] : memref<16x512xbf16, #tpu.memory_space<vmem>>, vector<16x256xbf16>
    %cst_32 = arith.constant 0.000000e+00 : bf16
    %57 = vector.broadcast %cst_32 : bf16 to vector<16x256xbf16>
    %58 = vector.shape_cast %42 : vector<1x256xi1> to vector<1x256xi1>
    %59 = vector.broadcast %58 : vector<1x256xi1> to vector<16x256xi1>
    %60 = arith.select %59, %56, %57 : vector<16x256xi1>, vector<16x256xbf16>
    %c0_33 = arith.constant 0 : index
    %c128_34 = arith.constant 128 : index
    %61 = vector.load %arg10[%c0_33, %c128_34] : memref<16x512xbf16, #tpu.memory_space<vmem>>, vector<16x256xbf16>
    %c0_35 = arith.constant 0 : index
    %c129 = arith.constant 129 : index
    %62 = vector.load %arg10[%c0_35, %c129] : memref<16x512xbf16, #tpu.memory_space<vmem>>, vector<16x256xbf16>
    %cst_36 = arith.constant 0.000000e+00 : bf16
    %63 = vector.broadcast %cst_36 : bf16 to vector<16x256xbf16>
    %64 = vector.shape_cast %44 : vector<1x256xi1> to vector<1x256xi1>
    %65 = vector.broadcast %64 : vector<1x256xi1> to vector<16x256xi1>
    %66 = arith.select %65, %62, %63 : vector<16x256xi1>, vector<16x256xbf16>
    %c0_37 = arith.constant 0 : index
    %c143 = arith.constant 143 : index
    %67 = vector.load %arg10[%c0_37, %c143] : memref<16x512xbf16, #tpu.memory_space<vmem>>, vector<16x256xbf16>
    %cst_38 = arith.constant 0.000000e+00 : bf16
    %68 = vector.broadcast %cst_38 : bf16 to vector<16x256xbf16>
    %69 = vector.shape_cast %42 : vector<1x256xi1> to vector<1x256xi1>
    %70 = vector.broadcast %69 : vector<1x256xi1> to vector<16x256xi1>
    %71 = arith.select %70, %67, %68 : vector<16x256xi1>, vector<16x256xbf16>
    %c0_39 = arith.constant 0 : index
    %c144 = arith.constant 144 : index
    %72 = vector.load %arg10[%c0_39, %c144] : memref<16x512xbf16, #tpu.memory_space<vmem>>, vector<16x256xbf16>
    %c0_40 = arith.constant 0 : index
    %c145 = arith.constant 145 : index
    %73 = vector.load %arg10[%c0_40, %c145] : memref<16x512xbf16, #tpu.memory_space<vmem>>, vector<16x256xbf16>
    %cst_41 = arith.constant 0.000000e+00 : bf16
    %74 = vector.broadcast %cst_41 : bf16 to vector<16x256xbf16>
    %75 = vector.shape_cast %44 : vector<1x256xi1> to vector<1x256xi1>
    %76 = vector.broadcast %75 : vector<1x256xi1> to vector<16x256xi1>
    %77 = arith.select %76, %73, %74 : vector<16x256xi1>, vector<16x256xbf16>
    %78 = tpu.concatenate %49, %50, %55, %60, %61, %66, %71, %72, %77 in 0 : vector<16x256xbf16>, vector<16x256xbf16>, vector<16x256xbf16>, vector<16x256xbf16>, vector<16x256xbf16>, vector<16x256xbf16>, vector<16x256xbf16>, vector<16x256xbf16>, vector<16x256xbf16> -> vector<144x256xbf16>
    %c0_42 = arith.constant 0 : index
    %c0_43 = arith.constant 0 : index
    %79 = vector.load %arg7[%c0_42, %c0_43] : memref<2x144xbf16, #tpu.memory_space<vmem>>, vector<2x144xbf16>
    %cst_44 = arith.constant dense<0.000000e+00> : vector<2x256xf32>
    %80 = tpu.matmul %79, %78, %cst_44 {dimension_numbers = #tpu.dot_dimension_numbers<[1], [0], [0], [1], [0, 0, 1, 1], [], []>} : vector<2x144xbf16>, vector<144x256xbf16>, vector<2x256xf32> -> vector<2x256xf32>
    %c0_45 = arith.constant 0 : index
    %c0_46 = arith.constant 0 : index
    %81 = vector.load %arg8[%c0_45, %c0_46] : memref<2x1xf32, #tpu.memory_space<vmem>>, vector<2x1xf32>
    %82 = vector.broadcast %81 : vector<2x1xf32> to vector<2x256xf32>
    %83 = arith.addf %80, %82 : vector<2x256xf32>
    %cst_47 = arith.constant 0.000000e+00 : f32
    %84 = vector.broadcast %cst_47 : f32 to vector<2x256xf32>
    %85 = arith.maximumf %83, %84 : vector<2x256xf32>
    %c0_48 = arith.constant 0 : index
    %c0_49 = arith.constant 0 : index
    %c0_50 = arith.constant 0 : index
    %86 = vector.load %arg9[%c0_48, %c0_49, %c0_50] : memref<1x2x256xf32, #tpu.memory_space<vmem>>, vector<1x2x256xf32>
    %87 = vector.shape_cast %86 : vector<1x2x256xf32> to vector<2x256xf32>
    %88 = vector.shape_cast %85 : vector<2x256xf32> to vector<1x2x256xf32>
    tpu.vector_store %arg9[%c0_48, %c0_49, %c0_50], %88 {strides = array<i32>} : memref<1x2x256xf32, #tpu.memory_space<vmem>>, vector<1x2x256xf32>,
    return
  }
  func.func @transform_0(%arg0: i32) -> (i32, i32, i32) {
    %c0_i32 = arith.constant 0 : i32
    %c0_i32_0 = arith.constant 0 : i32
    %c0_i32_1 = arith.constant 0 : i32
    return %arg0, %c0_i32, %c0_i32_0 : i32, i32, i32
  }
  func.func @transform_1(%arg0: i32) -> (i32, i32) {
    %c0_i32 = arith.constant 0 : i32
    %c0_i32_0 = arith.constant 0 : i32
    %c0_i32_1 = arith.constant 0 : i32
    return %c0_i32, %c0_i32_0 : i32, i32
  }
  func.func @transform_2(%arg0: i32) -> (i32, i32) {
    %c0_i32 = arith.constant 0 : i32
    %c0_i32_0 = arith.constant 0 : i32
    %c0_i32_1 = arith.constant 0 : i32
    return %c0_i32, %c0_i32_0 : i32, i32
  }
  func.func @transform_3(%arg0: i32) -> (i32, i32) {
    %c0_i32 = arith.constant 0 : i32
    %c0_i32_0 = arith.constant 0 : i32
    %c0_i32_1 = arith.constant 0 : i32
    return %c0_i32, %c0_i32_0 : i32, i32
  }
  func.func @transform_4(%arg0: i32) -> (i32, i32) {
    %c0_i32 = arith.constant 0 : i32
    %c0_i32_0 = arith.constant 0 : i32
    %c0_i32_1 = arith.constant 0 : i32
    return %c0_i32, %c0_i32_0 : i32, i32
  }
  func.func @transform_5(%arg0: i32) -> (i32, i32) {
    %c0_i32 = arith.constant 0 : i32
    %c0_i32_0 = arith.constant 0 : i32
    %c0_i32_1 = arith.constant 0 : i32
    return %c0_i32, %c0_i32_0 : i32, i32
  }
  func.func @transform_6(%arg0: i32) -> (i32, i32) {
    %c0_i32 = arith.constant 0 : i32
    %c0_i32_0 = arith.constant 0 : i32
    %c0_i32_1 = arith.constant 0 : i32
    return %c0_i32, %c0_i32_0 : i32, i32
  }
  func.func @transform_7(%arg0: i32) -> (i32, i32) {
    %c0_i32 = arith.constant 0 : i32
    %c0_i32_0 = arith.constant 0 : i32
    %c0_i32_1 = arith.constant 0 : i32
    return %c0_i32, %c0_i32_0 : i32, i32
  }
  func.func @transform_8(%arg0: i32) -> (i32, i32, i32) {
    %c0_i32 = arith.constant 0 : i32
    %c0_i32_0 = arith.constant 0 : i32
    %c0_i32_1 = arith.constant 0 : i32
    return %arg0, %c0_i32, %c0_i32_0 : i32, i32, i32
  }
}

</mosaic_0001>

<llo_original>
// kernel: tpu_custom_call.1
$region0: #{tpu_custom_call.1}
  #allocation0 [shape = 'u32[]', space=smem, size = 0x4, offset = 0x4, fixed_abs, tag = 'smem constant byte address 0x4 - core index']
  #allocation1 [shape = 'u32[72,128]{1,0:T(1,128)}', space=vmem, size = 0x9000, scoped, tag = 'internal scratch']
  #allocation2 [shape = 'bf16[16,512]{1,0:T(8,128)(2,1)}', space=vmem, size = 0x4000, scoped, tag = 'scratch operand']
  %s0 = inlined_call_operand.vmem [shape: bf16[2,8,256], index: 0, kind: input, shape index: {}]
  %s1 = inlined_call_operand.vmem [shape: bf16[256,64], index: 1, kind: input, shape index: {}]
  %s2 = inlined_call_operand.vmem [shape: bf16[8,8], index: 2, kind: input, shape index: {}]
  %s3 = inlined_call_operand.vmem [shape: f32[8,1], index: 3, kind: input, shape index: {}]
  %s4 = inlined_call_operand.vmem [shape: f32[8,64], index: 4, kind: input, shape index: {}]
  %s5 = inlined_call_operand.vmem [shape: bf16[64,256], index: 5, kind: input, shape index: {}]
  %s6 = inlined_call_operand.vmem [shape: bf16[2,144], index: 6, kind: input, shape index: {}]
  %s7 = inlined_call_operand.vmem [shape: f32[2,1], index: 7, kind: input, shape index: {}]
  %s8 = inlined_call_operand.hbm [shape: f32[2,2,256], index: 8, kind: output, shape index: {}]
  %s9 = sld [smem:[#allocation0]]
  $region65: #{tpu_custom_call.1} parent=0
    _
  %s11 = ssub.s32 1, %s9
  %s12 = scalar_select 0, %s11, %s9
  $region1: #{tpu_custom_call.1} parent=0
    #allocation3 [shape = 'u8[4096]{0}', space=vmem, size = 0x1000, scoped, tag = 'output window, operand 0']
    #allocation4 [shape = 's32[2]{0}', space=sflag, size = 0x8, scoped, tag = 'scoped memory for tpu_custom_call.1']
    %13 = vsyncpa [#allocation4], 0
    %s14 = scalar_lea.sflag [#allocation4], 1
    %15 = vsyncpa %s14, 0
    loop: start=0, step=1, limit=4
    $region2: #{tpu_custom_call.1} parent=1 // loop_pre_header
      _
    $region3: #{tpu_custom_call.1} parent=1 // loop_header
      %s17 = sphi 0, %s21
      %p18 = scmp.ge.s32.totalorder %s17, 4
      %s27 = sphi 0, %s29
      %s30 = sphi 0, %s27
      %s31 = sphi 0, %s30
      %s47 = sphi 0, %s31
      %s51 = sphi 0, %s51
      %s53 = sphi 0, %s51
      %s54 = sphi 0, %s53
      %s68 = sphi 0, %s54
      %s72 = sphi 0, %s72
      %s74 = sphi 0, %s72
      %s75 = sphi 0, %s74
      %s89 = sphi 0, %s75
      %s93 = sphi 0, %s93
      %s95 = sphi 0, %s93
      %s96 = sphi 0, %s95
      %s110 = sphi 0, %s96
      %s114 = sphi 0, %s114
      %s116 = sphi 0, %s114
      %s117 = sphi 0, %s116
      %s131 = sphi 0, %s117
      %s135 = sphi 0, %s135
      %s137 = sphi 0, %s135
      %s138 = sphi 0, %s137
      %s152 = sphi 0, %s138
      %s156 = sphi 0, %s156
      %s158 = sphi 0, %s156
      %s159 = sphi 0, %s158
      %s173 = sphi 0, %s159
      %s177 = sphi 0, %s177
      %s179 = sphi 0, %s177
      %s180 = sphi 0, %s179
      %s194 = sphi 0, %s180
      %s200 = sphi 0, %s202
      %s203 = sphi 0, %s200
      %s204 = sphi 0, %s203
      %s220 = sphi 0, %s204
    $region4: #{tpu_custom_call.1} parent=1 // loop_header_branch
      %20 = sbr.rel (%p18) target = $region8
    $region5: #{tpu_custom_call.1} parent=1 // loop_body
      %s22 = ssub.s32 %s17, 1
      %s23 = ssub.s32 %s17, 2
      %s24 = sadd.s32 %s17, 1
      %s25 = ssub.s32 %s17, %s24
      %p26 = scmp.eq.s32.totalorder %s25, 0
      %s28 = sadd.s32 %s27, 1
      %s29 = scalar_select %p26, %s27, %s28
      %p32 = pneg %p26
      %p33 = scmp.eq.s32.totalorder %s17, 1
      %p34 = por %p32, %p33
      %p35 = scmp.ne.s32.totalorder %s27, %s30
      %p36 = scmp.eq.s32.totalorder %s17, 0
      %p37 = por %p35, %p36
      %p38 = scmp.ne.s32.totalorder %s27, %s30
      %p39 = scmp.eq.s32.totalorder %s22, 1
      %p40 = por %p38, %p39
      %p41 = scmp.ne.s32.totalorder %s30, %s31
      %p42 = scmp.eq.s32.totalorder %s22, 0
      %p43 = por %p41, %p42
      %p44 = scmp.ne.s32.totalorder %s30, %s31
      %p45 = scmp.eq.s32.totalorder %s23, 1
      %p46 = por %p44, %p45
      %p48 = scmp.ne.s32.totalorder %s31, %s47
      %p49 = scmp.eq.s32.totalorder %s23, 0
      %p50 = por %p48, %p49
      %s52 = sadd.s32 %s51, 1
      %p55 = scmp.eq.s32.totalorder %s17, 1
      %p56 = scmp.ne.s32.totalorder %s51, %s53
      %p57 = scmp.eq.s32.totalorder %s17, 0
      %p58 = por %p56, %p57
      %p59 = scmp.ne.s32.totalorder %s51, %s53
      %p60 = scmp.eq.s32.totalorder %s22, 1
      %p61 = por %p59, %p60
      %p62 = scmp.ne.s32.totalorder %s53, %s54
      %p63 = scmp.eq.s32.totalorder %s22, 0
      %p64 = por %p62, %p63
      %p65 = scmp.ne.s32.totalorder %s53, %s54
      %p66 = scmp.eq.s32.totalorder %s23, 1
      %p67 = por %p65, %p66
      %p69 = scmp.ne.s32.totalorder %s54, %s68
      %p70 = scmp.eq.s32.totalorder %s23, 0
      %p71 = por %p69, %p70
      %s73 = sadd.s32 %s72, 1
      %p76 = scmp.eq.s32.totalorder %s17, 1
      %p77 = scmp.ne.s32.totalorder %s72, %s74
      %p78 = scmp.eq.s32.totalorder %s17, 0
      %p79 = por %p77, %p78
      %p80 = scmp.ne.s32.totalorder %s72, %s74
      %p81 = scmp.eq.s32.totalorder %s22, 1
      %p82 = por %p80, %p81
      %p83 = scmp.ne.s32.totalorder %s74, %s75
      %p84 = scmp.eq.s32.totalorder %s22, 0
      %p85 = por %p83, %p84
      %p86 = scmp.ne.s32.totalorder %s74, %s75
      %p87 = scmp.eq.s32.totalorder %s23, 1
      %p88 = por %p86, %p87
      %p90 = scmp.ne.s32.totalorder %s75, %s89
      %p91 = scmp.eq.s32.totalorder %s23, 0
      %p92 = por %p90, %p91
      %s94 = sadd.s32 %s93, 1
      %p97 = scmp.eq.s32.totalorder %s17, 1
      %p98 = scmp.ne.s32.totalorder %s93, %s95
      %p99 = scmp.eq.s32.totalorder %s17, 0
      %p100 = por %p98, %p99
      %p101 = scmp.ne.s32.totalorder %s93, %s95
      %p102 = scmp.eq.s32.totalorder %s22, 1
      %p103 = por %p101, %p102
      %p104 = scmp.ne.s32.totalorder %s95, %s96
      %p105 = scmp.eq.s32.totalorder %s22, 0
      %p106 = por %p104, %p105
      %p107 = scmp.ne.s32.totalorder %s95, %s96
      %p108 = scmp.eq.s32.totalorder %s23, 1
      %p109 = por %p107, %p108
      %p111 = scmp.ne.s32.totalorder %s96, %s110
      %p112 = scmp.eq.s32.totalorder %s23, 0
      %p113 = por %p111, %p112
      %s115 = sadd.s32 %s114, 1
      %p118 = scmp.eq.s32.totalorder %s17, 1
      %p119 = scmp.ne.s32.totalorder %s114, %s116
      %p120 = scmp.eq.s32.totalorder %s17, 0
      %p121 = por %p119, %p120
      %p122 = scmp.ne.s32.totalorder %s114, %s116
      %p123 = scmp.eq.s32.totalorder %s22, 1
      %p124 = por %p122, %p123
      %p125 = scmp.ne.s32.totalorder %s116, %s117
      %p126 = scmp.eq.s32.totalorder %s22, 0
      %p127 = por %p125, %p126
      %p128 = scmp.ne.s32.totalorder %s116, %s117
      %p129 = scmp.eq.s32.totalorder %s23, 1
      %p130 = por %p128, %p129
      %p132 = scmp.ne.s32.totalorder %s117, %s131
      %p133 = scmp.eq.s32.totalorder %s23, 0
      %p134 = por %p132, %p133
      %s136 = sadd.s32 %s135, 1
      %p139 = scmp.eq.s32.totalorder %s17, 1
      %p140 = scmp.ne.s32.totalorder %s135, %s137
      %p141 = scmp.eq.s32.totalorder %s17, 0
      %p142 = por %p140, %p141
      %p143 = scmp.ne.s32.totalorder %s135, %s137
      %p144 = scmp.eq.s32.totalorder %s22, 1
      %p145 = por %p143, %p144
      %p146 = scmp.ne.s32.totalorder %s137, %s138
      %p147 = scmp.eq.s32.totalorder %s22, 0
      %p148 = por %p146, %p147
      %p149 = scmp.ne.s32.totalorder %s137, %s138
      %p150 = scmp.eq.s32.totalorder %s23, 1
      %p151 = por %p149, %p150
      %p153 = scmp.ne.s32.totalorder %s138, %s152
      %p154 = scmp.eq.s32.totalorder %s23, 0
      %p155 = por %p153, %p154
      %s157 = sadd.s32 %s156, 1
      %p160 = scmp.eq.s32.totalorder %s17, 1
      %p161 = scmp.ne.s32.totalorder %s156, %s158
      %p162 = scmp.eq.s32.totalorder %s17, 0
      %p163 = por %p161, %p162
      %p164 = scmp.ne.s32.totalorder %s156, %s158
      %p165 = scmp.eq.s32.totalorder %s22, 1
      %p166 = por %p164, %p165
      %p167 = scmp.ne.s32.totalorder %s158, %s159
      %p168 = scmp.eq.s32.totalorder %s22, 0
      %p169 = por %p167, %p168
      %p170 = scmp.ne.s32.totalorder %s158, %s159
      %p171 = scmp.eq.s32.totalorder %s23, 1
      %p172 = por %p170, %p171
      %p174 = scmp.ne.s32.totalorder %s159, %s173
      %p175 = scmp.eq.s32.totalorder %s23, 0
      %p176 = por %p174, %p175
      %s178 = sadd.s32 %s177, 1
      %p181 = scmp.eq.s32.totalorder %s17, 1
      %p182 = scmp.ne.s32.totalorder %s177, %s179
      %p183 = scmp.eq.s32.totalorder %s17, 0
      %p184 = por %p182, %p183
      %p185 = scmp.ne.s32.totalorder %s177, %s179
      %p186 = scmp.eq.s32.totalorder %s22, 1
      %p187 = por %p185, %p186
      %p188 = scmp.ne.s32.totalorder %s179, %s180
      %p189 = scmp.eq.s32.totalorder %s22, 0
      %p190 = por %p188, %p189
      %p191 = scmp.ne.s32.totalorder %s179, %s180
      %p192 = scmp.eq.s32.totalorder %s23, 1
      %p193 = por %p191, %p192
      %p195 = scmp.ne.s32.totalorder %s180, %s194
      %p196 = scmp.eq.s32.totalorder %s23, 0
      %p197 = por %p195, %p196
      %s198 = ssub.s32 %s17, %s24
      %p199 = scmp.eq.s32.totalorder %s198, 0
      %s201 = sadd.s32 %s200, 1
      %s202 = scalar_select %p199, %s200, %s201
      %p205 = pneg %p199
      %p206 = scmp.eq.s32.totalorder %s17, 1
      %p207 = por %p205, %p206
      %p208 = scmp.ne.s32.totalorder %s200, %s203
      %p209 = scmp.eq.s32.totalorder %s17, 0
      %p210 = por %p208, %p209
      %p211 = scmp.ne.s32.totalorder %s200, %s203
      %p212 = scmp.eq.s32.totalorder %s22, 1
      %p213 = por %p211, %p212
      %p214 = scmp.ne.s32.totalorder %s203, %s204
      %p215 = scmp.eq.s32.totalorder %s22, 0
      %p216 = por %p214, %p215
      %p217 = scmp.ne.s32.totalorder %s203, %s204
      %p218 = scmp.eq.s32.totalorder %s23, 1
      %p219 = por %p217, %p218
      %p221 = scmp.ne.s32.totalorder %s204, %s220
      %p222 = scmp.eq.s32.totalorder %s23, 0
      %p223 = por %p221, %p222
      %p224 = scmp.le.s32.totalorder 1, %s17
      %p225 = scmp.lt.s32.totalorder %s17, 3
      %p226 = pnand %p224, %p225
      %p227 = pneg %p226
      // Predicated region
      $region9: #{tpu_custom_call.1} parent=5 // pred_check
        _
      $region10: #{tpu_custom_call.1} parent=5 // pred_check_branch
        %229 = sbr.rel (%p226) target = $region12
      $region11: #{tpu_custom_call.1} parent=5 // pred_region
        %s230 = ssub.s32 %s17, 1
        // Predicated region
        $region13: #{tpu_custom_call.1} parent=11 // pred_check
          %p231 = pneg %p64
        $region14: #{tpu_custom_call.1} parent=11 // pred_check_branch
          %233 = sbr.rel (%p231) target = $region16
        $region15: #{tpu_custom_call.1} parent=11 // pred_region
          _
        $region16: #{tpu_custom_call.1} parent=11 // pred_fallthru
          _
        // Predicated region
        $region17: #{tpu_custom_call.1} parent=11 // pred_check
          %p234 = pneg %p85
        $region18: #{tpu_custom_call.1} parent=11 // pred_check_branch
          %236 = sbr.rel (%p234) target = $region20
        $region19: #{tpu_custom_call.1} parent=11 // pred_region
          _
        $region20: #{tpu_custom_call.1} parent=11 // pred_fallthru
          _
        // Predicated region
        $region21: #{tpu_custom_call.1} parent=11 // pred_check
          %p237 = pneg %p106
        $region22: #{tpu_custom_call.1} parent=11 // pred_check_branch
          %239 = sbr.rel (%p237) target = $region24
        $region23: #{tpu_custom_call.1} parent=11 // pred_region
          _
        $region24: #{tpu_custom_call.1} parent=11 // pred_fallthru
          _
        // Predicated region
        $region25: #{tpu_custom_call.1} parent=11 // pred_check
          %p240 = pneg %p127
        $region26: #{tpu_custom_call.1} parent=11 // pred_check_branch
          %242 = sbr.rel (%p240) target = $region28
        $region27: #{tpu_custom_call.1} parent=11 // pred_region
          _
        $region28: #{tpu_custom_call.1} parent=11 // pred_fallthru
          _
        // Predicated region
        $region29: #{tpu_custom_call.1} parent=11 // pred_check
          %p243 = pneg %p148
        $region30: #{tpu_custom_call.1} parent=11 // pred_check_branch
          %245 = sbr.rel (%p243) target = $region32
        $region31: #{tpu_custom_call.1} parent=11 // pred_region
          _
        $region32: #{tpu_custom_call.1} parent=11 // pred_fallthru
          _
        // Predicated region
        $region33: #{tpu_custom_call.1} parent=11 // pred_check
          %p246 = pneg %p169
        $region34: #{tpu_custom_call.1} parent=11 // pred_check_branch
          %248 = sbr.rel (%p246) target = $region36
        $region35: #{tpu_custom_call.1} parent=11 // pred_region
          _
        $region36: #{tpu_custom_call.1} parent=11 // pred_fallthru
          _
        // Predicated region
        $region37: #{tpu_custom_call.1} parent=11 // pred_check
          %p249 = pneg %p190
        $region38: #{tpu_custom_call.1} parent=11 // pred_check_branch
          %251 = sbr.rel (%p249) target = $region40
        $region39: #{tpu_custom_call.1} parent=11 // pred_region
          _
        $region40: #{tpu_custom_call.1} parent=11 // pred_fallthru
          _
      $region12: #{tpu_custom_call.1} parent=5 // pred_fallthru
        _
      %p252 = scmp.lt.s32.totalorder %s17, 2
      // Predicated region
      $region41: #{tpu_custom_call.1} parent=5 // pred_check
        %p253 = pneg %p252
      $region42: #{tpu_custom_call.1} parent=5 // pred_check_branch
        %255 = sbr.rel (%p253) target = $region44
      $region43: #{tpu_custom_call.1} parent=5 // pred_region
        // Predicated region
        $region45: #{tpu_custom_call.1} parent=43 // pred_check
          %p256 = pneg %p37
        $region46: #{tpu_custom_call.1} parent=43 // pred_check_branch
          %258 = sbr.rel (%p256) target = $region48
        $region47: #{tpu_custom_call.1} parent=43 // pred_region
          %p259 = scmp.lt.s32.totalorder %s17, 1
          %s260 = scalar_select %p259, %s17, 1
          %s261 = smul.addr %s260, 2
          %s262 = smul.addr %s261, 4
          %s263 = scalar_lea.vmem %s0, %s262
        $region48: #{tpu_custom_call.1} parent=43 // pred_fallthru
          _
      $region44: #{tpu_custom_call.1} parent=5 // pred_fallthru
        _
      %p264 = scmp.le.s32.totalorder 1, %s17
      %p265 = scmp.lt.s32.totalorder %s17, 3
      %p266 = pnand %p264, %p265
      %p267 = pneg %p266
      // Predicated region
      $region49: #{tpu_custom_call.1} parent=5 // pred_check
        _
      $region50: #{tpu_custom_call.1} parent=5 // pred_check_branch
        %269 = sbr.rel (%p266) target = $region52
      $region51: #{tpu_custom_call.1} parent=5 // pred_region
        %s270 = ssub.s32 %s17, 1
        %p271 = scmp.lt.s32.totalorder %s22, 1
        %s272 = scalar_select %p271, %s22, 1
        %s273 = smul.addr %s272, 2
        %s274 = smul.addr %s273, 4
        %s275 = scalar_lea.vmem %s0, %s274
        %p276 = pneg %p43
        %p277 = pneg %p40
        %p278 = pneg %p64
        %p279 = pneg %p61
        %p280 = pneg %p85
        %p281 = pneg %p82
        %p282 = pneg %p106
        %p283 = pneg %p103
        %p284 = pneg %p127
        %p285 = pneg %p124
        %p286 = pneg %p148
        %p287 = pneg %p145
        %p288 = pneg %p169
        %p289 = pneg %p166
        %p290 = pneg %p190
        %p291 = pneg %p187
        %p292 = pneg %p216
        %p293 = pneg %p213
        %s294 = sand.u32 %s203, 1
        %s295 = scalar_lea.sflag [#allocation4], %s294
        %s296 = sand.u32 %s203, 1
        %s297 = smul.addr %s296, 4
        %s298 = scalar_lea.vmem [#allocation3], %s297
        %p299 = scmp.lt.s32.totalorder %s22, 1
        %s300 = scalar_select %p299, %s22, 1
        %s301 = smul.addr %s300, 2
        %s302 = smul.addr %s301, 4
        %s303 = scalar_lea.vmem %s0, %s302
        %307 = vst [vmem:[#allocation2] sm:$0xf] 0
        %308 = vst [vmem:[#allocation2 + $0x10] sm:$0xf] 0
        %309 = vst [vmem:[#allocation2 + $0xc] sm:$0xf] 0
        %310 = vst [vmem:[#allocation2 + $0x1c] sm:$0xf] 0
        %v311 = vld [vmem:[%s303] sm:$0xff]
        %v312 = vld [vmem:[%s1] sm:$0xf]
        %v313 = vld [vmem:[%s1 + $0x4] sm:$0xf]
        %v314 = vld [vmem:[%s1 + $0x8] sm:$0xf]
        %v315 = vld [vmem:[%s1 + $0xc] sm:$0xf]
        %v316 = vld [vmem:[%s1 + $0x10] sm:$0xf]
        %v317 = vld [vmem:[%s1 + $0x14] sm:$0xf]
        %v318 = vld [vmem:[%s1 + $0x18] sm:$0xf]
        %v319 = vld [vmem:[%s1 + $0x1c] sm:$0xf]
        %v320 = vld [vmem:[%s1 + $0x20] sm:$0xf]
        %v321 = vld [vmem:[%s1 + $0x24] sm:$0xf]
        %v322 = vld [vmem:[%s1 + $0x28] sm:$0xf]
        %v323 = vld [vmem:[%s1 + $0x2c] sm:$0xf]
        %v324 = vld [vmem:[%s1 + $0x30] sm:$0xf]
        %v325 = vld [vmem:[%s1 + $0x34] sm:$0xf]
        %v326 = vld [vmem:[%s1 + $0x38] sm:$0xf]
        %v327 = vld [vmem:[%s1 + $0x3c] sm:$0xf]
        %v328 = vld [vmem:[%s1 + $0x40] sm:$0xf]
        %v329 = vld [vmem:[%s1 + $0x44] sm:$0xf]
        %v330 = vld [vmem:[%s1 + $0x48] sm:$0xf]
        %v331 = vld [vmem:[%s1 + $0x4c] sm:$0xf]
        %v332 = vld [vmem:[%s1 + $0x50] sm:$0xf]
        %v333 = vld [vmem:[%s1 + $0x54] sm:$0xf]
        %v334 = vld [vmem:[%s1 + $0x58] sm:$0xf]
        %v335 = vld [vmem:[%s1 + $0x5c] sm:$0xf]
        %v336 = vld [vmem:[%s1 + $0x60] sm:$0xf]
        %v337 = vld [vmem:[%s1 + $0x64] sm:$0xf]
        %v338 = vld [vmem:[%s1 + $0x68] sm:$0xf]
        %v339 = vld [vmem:[%s1 + $0x6c] sm:$0xf]
        %v340 = vld [vmem:[%s1 + $0x70] sm:$0xf]
        %v341 = vld [vmem:[%s1 + $0x74] sm:$0xf]
        %v342 = vld [vmem:[%s1 + $0x78] sm:$0xf]
        %v343 = vld [vmem:[%s1 + $0x7c] sm:$0xf]
        %v345 = vunpack.c.l.b16 %v311
        %v346 = vunpack.c.h.b16 %v311
        %v347 = vpack.c.b16 %v345, %v345
        %v348 = vpack.c.b16 %v346, %v346
        %v383 = vunpack.c.l.b16 %v312
        %v384 = vunpack.c.l.b16 %v313
        %v385 = vunpack.c.l.b16 %v314
        %v386 = vunpack.c.l.b16 %v315
        %v387 = vunpack.c.l.b16 %v316
        %v388 = vunpack.c.l.b16 %v317
        %v389 = vunpack.c.l.b16 %v318
        %v390 = vunpack.c.l.b16 %v319
        %v391 = vunpack.c.l.b16 %v320
        %v392 = vunpack.c.l.b16 %v321
        %v393 = vunpack.c.l.b16 %v322
        %v394 = vunpack.c.l.b16 %v323
        %v395 = vunpack.c.l.b16 %v324
        %v396 = vunpack.c.l.b16 %v325
        %v397 = vunpack.c.l.b16 %v326
        %v398 = vunpack.c.l.b16 %v327
        %v399 = vunpack.c.l.b16 %v328
        %v400 = vunpack.c.l.b16 %v329
        %v401 = vunpack.c.l.b16 %v330
        %v402 = vunpack.c.l.b16 %v331
        %v403 = vunpack.c.l.b16 %v332
        %v404 = vunpack.c.l.b16 %v333
        %v405 = vunpack.c.l.b16 %v334
        %v406 = vunpack.c.l.b16 %v335
        %v407 = vunpack.c.l.b16 %v336
        %v408 = vunpack.c.l.b16 %v337
        %v409 = vunpack.c.l.b16 %v338
        %v410 = vunpack.c.l.b16 %v339
        %v411 = vunpack.c.l.b16 %v340
        %v412 = vunpack.c.l.b16 %v341
        %v413 = vunpack.c.l.b16 %v342
        %v414 = vunpack.c.l.b16 %v343
        %v415 = vpack.c.b16 %v384, %v383
        %v416 = vpack.c.b16 %v386, %v385
        %v417 = vpack.c.b16 %v388, %v387
        %v418 = vpack.c.b16 %v390, %v389
        %v419 = vpack.c.b16 %v392, %v391
        %v420 = vpack.c.b16 %v394, %v393
        %v421 = vpack.c.b16 %v396, %v395
        %v422 = vpack.c.b16 %v398, %v397
        %v423 = vpack.c.b16 %v400, %v399
        %v424 = vpack.c.b16 %v402, %v401
        %v425 = vpack.c.b16 %v404, %v403
        %v426 = vpack.c.b16 %v406, %v405
        %v427 = vpack.c.b16 %v408, %v407
        %v428 = vpack.c.b16 %v410, %v409
        %v429 = vpack.c.b16 %v412, %v411
        %v430 = vpack.c.b16 %v414, %v413
        %447 = vmatpush.bf16.msra.mxu0 %v422
        %448 = vmatpush.bf16.msra.mxu0 %v421
        %449 = vmatpush.bf16.msra.mxu0 %v420
        %450 = vmatpush.bf16.msra.mxu0 %v419
        %451 = vmatpush.bf16.msra.mxu0 %v418
        %452 = vmatpush.bf16.msra.mxu0 %v417
        %453 = vmatpush.bf16.msra.mxu0 %v416
        %454 = vmatpush.bf16.msra.mxu0 %v415
        %455 = vmatmul.bf16.gmra.mxu0 %v347
        %v456 = vpop.f32.mrf.mxu0
        %v457 = vadd.f32 0.0, %v456
        %v458 = vpop.f32.mrf.mxu0
        %459 = vdwg.mxu0
        %460 = vmatpush.bf16.msra.mxu0 %v430
        %461 = vmatpush.bf16.msra.mxu0 %v429
        %462 = vmatpush.bf16.msra.mxu0 %v428
        %463 = vmatpush.bf16.msra.mxu0 %v427
        %464 = vmatpush.bf16.msra.mxu0 %v426
        %465 = vmatpush.bf16.msra.mxu0 %v425
        %466 = vmatpush.bf16.msra.mxu0 %v424
        %467 = vmatpush.bf16.msra.mxu0 %v423
        %468 = vmatmul.bf16.gmra.mxu0 %v348
        %v469 = vpop.f32.mrf.mxu0
        %v470 = vadd.f32 %v457, %v469
        %v471 = vpop.f32.mrf.mxu0
        %472 = vdwg.mxu0
        %v473 = vld [vmem:[%s2] sm:$0xf]
        %v474 = vpack.c.bf16 %v470, %v470
        %v475 = vld [vmem:[%s3] sm:$0xff]
        %477 = vset.pattern.permute.xlu0 0
        %478 = vperm.xlu0 %477, %v475
        %v479 = vpop.permute.xlu0 %478
        %vm481 = vcmask 64512
        %v483 = vsel %vm481, %v473, 0
        %vm485 = vcmask 1043456
        %v487 = vsel %vm485, %v474, 0
        %489 = vmatpush.bf16.msra.mxu0 0
        %490 = vmatpush.bf16.msra.mxu0 0
        %491 = vmatpush.bf16.msra.mxu0 0
        %492 = vmatpush.bf16.msra.mxu0 0
        %493 = vmatpush.bf16.msra.mxu0 0
        %494 = vmatpush.bf16.msra.mxu0 0
        %495 = vmatpush.bf16.msra.mxu0 0
        %496 = vmatpush.bf16.msra.mxu0 %v487
        %497 = vmatmul.bf16.gmra.mxu0 %v483
        %v498 = vpop.f32.mrf.mxu0
        %v499 = vadd.f32 %v479, %v498
        %v500 = vpop.f32.mrf.mxu0
        %501 = vdwg.mxu0
        %v502 = vmax.f32 %v499, 0.0
        %v503 = vld [vmem:[%s4] sm:$0xff]
        %v504 = vmul.f32 %v502, %v503
        %v505 = vpack.c.bf16 %v504, %v504
        %v506 = vld [vmem:[%s5] sm:$0xff]
        %v507 = vld [vmem:[%s5 + $0x8] sm:$0xff]
        %v508 = vld [vmem:[%s5 + $0x10] sm:$0xff]
        %v509 = vld [vmem:[%s5 + $0x18] sm:$0xff]
        %v510 = vld [vmem:[%s5 + $0x20] sm:$0xff]
        %v511 = vld [vmem:[%s5 + $0x28] sm:$0xff]
        %v512 = vld [vmem:[%s5 + $0x30] sm:$0xff]
        %v513 = vld [vmem:[%s5 + $0x38] sm:$0xff]
        %v522 = vunpack.c.l.b16 %v506
        %v523 = vunpack.c.h.b16 %v506
        %v524 = vunpack.c.l.b16 %v507
        %v525 = vunpack.c.h.b16 %v507
        %v526 = vunpack.c.l.b16 %v508
        %v527 = vunpack.c.h.b16 %v508
        %v528 = vunpack.c.l.b16 %v509
        %v529 = vunpack.c.h.b16 %v509
        %v530 = vunpack.c.l.b16 %v510
        %v531 = vunpack.c.h.b16 %v510
        %v532 = vunpack.c.l.b16 %v511
        %v533 = vunpack.c.h.b16 %v511
        %v534 = vunpack.c.l.b16 %v512
        %v535 = vunpack.c.h.b16 %v512
        %v536 = vunpack.c.l.b16 %v513
        %v537 = vunpack.c.h.b16 %v513
        %v538 = vpack.c.b16 %v524, %v522
        %v539 = vpack.c.b16 %v525, %v523
        %v540 = vpack.c.b16 %v528, %v526
        %v541 = vpack.c.b16 %v529, %v527
        %v542 = vpack.c.b16 %v532, %v530
        %v543 = vpack.c.b16 %v533, %v531
        %v544 = vpack.c.b16 %v536, %v534
        %v545 = vpack.c.b16 %v537, %v535
        %vm554 = vcmask 523264
        %v556 = vsel %vm554, %v505, 0
        %558 = vmatpush.bf16.msra.mxu0 0
        %559 = vmatpush.bf16.msra.mxu0 0
        %560 = vmatpush.bf16.msra.mxu0 0
        %561 = vmatpush.bf16.msra.mxu0 0
        %562 = vmatpush.bf16.msra.mxu0 %v544
        %563 = vmatpush.bf16.msra.mxu0 %v542
        %564 = vmatpush.bf16.msra.mxu0 %v540
        %565 = vmatpush.bf16.msra.mxu0 %v538
        %566 = vmatmul.bf16.gmra.mxu0 %v556
        %v567 = vpop.f32.mrf.mxu0
        %v568 = vadd.f32 0.0, %v567
        %v569 = vpop.f32.mrf.mxu0
        %570 = vdwg.mxu0
        %571 = vmatpush.bf16.msra.mxu0 0
        %572 = vmatpush.bf16.msra.mxu0 0
        %573 = vmatpush.bf16.msra.mxu0 0
        %574 = vmatpush.bf16.msra.mxu0 0
        %575 = vmatpush.bf16.msra.mxu0 %v545
        %576 = vmatpush.bf16.msra.mxu0 %v543
        %577 = vmatpush.bf16.msra.mxu0 %v541
        %578 = vmatpush.bf16.msra.mxu0 %v539
        %579 = vmatmul.bf16.gmra.mxu0 %v556
        %v580 = vpop.f32.mrf.mxu0
        %v581 = vadd.f32 0.0, %v580
        %v582 = vpop.f32.mrf.mxu0
        %583 = vdwg.mxu0
        %584 = vst [vmem:[#allocation2 + $0x4] sm:$0xff] %v311
        %v585 = vpack.c.bf16 %v581, %v568
        %586 = vst [vmem:[#allocation2 + $0x14] sm:$0xff] %v585
        %v587 = vlaneseq
        %v588 = vand.u32 %v587, 127
        %v589 = vadd.s32 %v588, 128
        %vm590 = vcmp.lt.s32.totalorder %v588, 0
        %v591 = vsub.s32 0, %v588
        %v592 = vsel %vm590, %v591, %v588
        %v593 = vshrl.u32 %v592, 4
        %v594 = vand.u32 %v592, 15
        %v595 = vsub.s32 0, %v594
        %v596 = vsel %vm590, %v595, %v594
        %vm597 = vcmp.lt.s32.totalorder %v589, 0
        %v598 = vsub.s32 0, %v589
        %v599 = vsel %vm597, %v598, %v589
        %v600 = vshrl.u32 %v599, 4
        %v601 = vand.u32 %v599, 15
        %v602 = vsub.s32 0, %v601
        %v603 = vsel %vm597, %v602, %v601
        %vm604 = vcmp.ne.s32.totalorder %v596, 0
        %vm605 = vcmp.ne.s32.totalorder %v603, 0
        %vm606 = vcmp.lt.s32.totalorder %v596, 0
        %vm607 = vcmp.lt.s32.totalorder %v603, 0
        %vm608 = vmand %vm606, %vm604
        %vm609 = vmand %vm607, %vm605
        %v610 = vadd.s32 %v596, 16
        %v611 = vadd.s32 %v603, 16
        %v612 = vsel %vm608, %v610, %v596
        %v613 = vsel %vm609, %v611, %v603
        %vm614 = vcmp.ge.s32.totalorder %v612, 1
        %vm615 = vcmp.ge.s32.totalorder %v613, 1
        %vm616 = vcmp.le.s32.totalorder %v612, 14
        %vm617 = vcmp.le.s32.totalorder %v613, 14
        %v618 = vld [vmem:[#allocation2] sm:$0xff]
        %v619 = vld [vmem:[#allocation2 + $0x8] sm:$0xf]
        %v620 = vld [vmem:[#allocation2 + $0x10] sm:$0xff]
        %v621 = vld [vmem:[#allocation2 + $0x18] sm:$0xf]
        %v622 = vsel %vm614, 1, 0
        %v623 = vsel %vm615, 1, 0
        %vm624 = vcmp.eq.s32.totalorder %v622, 1
        %vm625 = vcmp.eq.s32.totalorder %v623, 1
        %vm626 = vmpackc.low %vm625, %vm624
        %v627 = vsel %vm626, 65537, 0
        %628 = vrot.lane.b32.xlu0 %v627, 111
        %v629 = vpop.permute.xlu0 %628
        %v630 = vrot.slane %v629, 4
        %vm631 = vcmask 908288
        %v632 = vsel %vm631, %v630, %v629
        %v633 = vunpack.c.l.b16 %v632
        %v634 = vunpack.c.h.b16 %v632
        %v635 = vunpack.c.l.b16 0
        %v636 = vunpack.c.h.b16 0
        %vm637 = vcmp.ne.s32.totalorder %v633, %v635
        %vm638 = vcmp.ne.s32.totalorder %v634, %v636
        %vm639 = vmpackc.low %vm638, %vm637
        %v640 = vunpack.c.l.b16 %v630
        %v641 = vunpack.c.h.b16 %v630
        %v642 = vunpack.c.l.b16 0
        %v643 = vunpack.c.h.b16 0
        %vm644 = vcmp.ne.s32.totalorder %v640, %v642
        %vm645 = vcmp.ne.s32.totalorder %v641, %v643
        %vm646 = vmpackc.low %vm645, %vm644
        %v647 = vsel %vm639, %v618, 0
        %v648 = vsel %vm646, %v619, 0
        %v649 = vsel %vm639, %v620, 0
        %v650 = vsel %vm646, %v621, 0
        %v651 = vsel %vm616, 1, 0
        %v652 = vsel %vm617, 1, 0
        %vm653 = vcmp.eq.s32.totalorder %v651, 1
        %vm654 = vcmp.eq.s32.totalorder %v652, 1
        %vm655 = vmpackc.low %vm654, %vm653
        %v656 = vsel %vm655, 65537, 0
        %657 = vrot.lane.b32.xlu0 %v656, 113
        %v658 = vpop.permute.xlu0 %657
        %v659 = vrot.slane %v658, 4
        %vm660 = vcmask 924672
        %v661 = vsel %vm660, %v659, %v658
        %v662 = vunpack.c.l.b16 %v661
        %v663 = vunpack.c.h.b16 %v661
        %v664 = vunpack.c.l.b16 0
        %v665 = vunpack.c.h.b16 0
        %vm666 = vcmp.ne.s32.totalorder %v662, %v664
        %vm667 = vcmp.ne.s32.totalorder %v663, %v665
        %vm668 = vmpackc.low %vm667, %vm666
        %v669 = vunpack.c.l.b16 %v659
        %v670 = vunpack.c.h.b16 %v659
        %v671 = vunpack.c.l.b16 0
        %v672 = vunpack.c.h.b16 0
        %vm673 = vcmp.ne.s32.totalorder %v669, %v671
        %vm674 = vcmp.ne.s32.totalorder %v670, %v672
        %vm675 = vmpackc.low %vm674, %vm673
        %v676 = vsel %vm668, %v618, 0
        %v677 = vsel %vm675, %v619, 0
        %v678 = vsel %vm668, %v620, 0
        %v679 = vsel %vm675, %v621, 0
        %680 = vrot.lane.b32.xlu0 %v627, 127
        %v681 = vpop.permute.xlu0 %680
        %v682 = vrot.slane %v681, 4
        %vm683 = vcmask 1039360
        %v684 = vsel %vm683, %v682, %v681
        %v685 = vunpack.c.l.b16 %v684
        %v686 = vunpack.c.h.b16 %v684
        %v687 = vunpack.c.l.b16 0
        %v688 = vunpack.c.h.b16 0
        %vm689 = vcmp.ne.s32.totalorder %v685, %v687
        %vm690 = vcmp.ne.s32.totalorder %v686, %v688
        %vm691 = vmpackc.low %vm690, %vm689
        %v692 = vunpack.c.l.b16 %v682
        %v693 = vunpack.c.h.b16 %v682
        %v694 = vunpack.c.l.b16 0
        %v695 = vunpack.c.h.b16 0
        %vm696 = vcmp.ne.s32.totalorder %v692, %v694
        %vm697 = vcmp.ne.s32.totalorder %v693, %v695
        %vm698 = vmpackc.low %vm697, %vm696
        %v699 = vsel %vm691, %v618, 0
        %v700 = vsel %vm698, %v619, 0
        %v701 = vsel %vm691, %v620, 0
        %v702 = vsel %vm698, %v621, 0
        %v703 = vld [vmem:[#allocation2 + $0x4] sm:$0xff]
        %v704 = vld [vmem:[#allocation2 + $0x14] sm:$0xff]
        %v705 = vld [vmem:[#allocation2 + $0x4] sm:$0xff]
        %v706 = vld [vmem:[#allocation2 + $0xc] sm:$0xf]
        %v707 = vld [vmem:[#allocation2 + $0x14] sm:$0xff]
        %v708 = vld [vmem:[#allocation2 + $0x1c] sm:$0xf]
        %709 = vrot.lane.b32.xlu0 %v656, 1
        %v710 = vpop.permute.xlu0 %709
        %v711 = vrot.slane %v710, 4
        %vm712 = vcmask 7168
        %v713 = vsel %vm712, %v711, %v710
        %v714 = vunpack.c.l.b16 %v713
        %v715 = vunpack.c.h.b16 %v713
        %v716 = vunpack.c.l.b16 0
        %v717 = vunpack.c.h.b16 0
        %vm718 = vcmp.ne.s32.totalorder %v714, %v716
        %vm719 = vcmp.ne.s32.totalorder %v715, %v717
        %vm720 = vmpackc.low %vm719, %vm718
        %v721 = vunpack.c.l.b16 %v711
        %v722 = vunpack.c.h.b16 %v711
        %v723 = vunpack.c.l.b16 0
        %v724 = vunpack.c.h.b16 0
        %vm725 = vcmp.ne.s32.totalorder %v721, %v723
        %vm726 = vcmp.ne.s32.totalorder %v722, %v724
        %vm727 = vmpackc.low %vm726, %vm725
        %v728 = vsel %vm720, %v705, 0
        %v729 = vsel %vm727, %v706, 0
        %v730 = vsel %vm720, %v707, 0
        %v731 = vsel %vm727, %v708, 0
        %732 = vrot.lane.b32.xlu0 %v627, 15
        %v733 = vpop.permute.xlu0 %732
        %v734 = vrot.slane %v733, 4
        %vm735 = vcmask 121856
        %v736 = vsel %vm735, %v734, %v733
        %v737 = vunpack.c.l.b16 %v736
        %v738 = vunpack.c.h.b16 %v736
        %v739 = vunpack.c.l.b16 0
        %v740 = vunpack.c.h.b16 0
        %vm741 = vcmp.ne.s32.totalorder %v737, %v739
        %vm742 = vcmp.ne.s32.totalorder %v738, %v740
        %vm743 = vmpackc.low %vm742, %vm741
        %v744 = vunpack.c.l.b16 %v734
        %v745 = vunpack.c.h.b16 %v734
        %v746 = vunpack.c.l.b16 0
        %v747 = vunpack.c.h.b16 0
        %vm748 = vcmp.ne.s32.totalorder %v744, %v746
        %vm749 = vcmp.ne.s32.totalorder %v745, %v747
        %vm750 = vmpackc.low %vm749, %vm748
        %v751 = vsel %vm743, %v705, 0
        %v752 = vsel %vm750, %v706, 0
        %v753 = vsel %vm743, %v707, 0
        %v754 = vsel %vm750, %v708, 0
        %755 = vrot.lane.b32.xlu0 %v656, 17
        %v756 = vpop.permute.xlu0 %755
        %v757 = vrot.slane %v756, 4
        %vm758 = vcmask 138240
        %v759 = vsel %vm758, %v757, %v756
        %v760 = vunpack.c.l.b16 %v759
        %v761 = vunpack.c.h.b16 %v759
        %v762 = vunpack.c.l.b16 0
        %v763 = vunpack.c.h.b16 0
        %vm764 = vcmp.ne.s32.totalorder %v760, %v762
        %vm765 = vcmp.ne.s32.totalorder %v761, %v763
        %vm766 = vmpackc.low %vm765, %vm764
        %v767 = vunpack.c.l.b16 %v757
        %v768 = vunpack.c.h.b16 %v757
        %v769 = vunpack.c.l.b16 0
        %v770 = vunpack.c.h.b16 0
        %vm771 = vcmp.ne.s32.totalorder %v767, %v769
        %vm772 = vcmp.ne.s32.totalorder %v768, %v770
        %vm773 = vmpackc.low %vm772, %vm771
        %v774 = vsel %vm766, %v705, 0
        %v775 = vsel %vm773, %v706, 0
        %v776 = vsel %vm766, %v707, 0
        %v777 = vsel %vm773, %v708, 0
        %v782 = vunpack.c.l.b16 %v647
        %v783 = vunpack.c.h.b16 %v647
        %v784 = vunpack.c.l.b16 %v648
        %v785 = vunpack.c.l.b16 %v649
        %v786 = vunpack.c.h.b16 %v649
        %v787 = vunpack.c.l.b16 %v650
        %v788 = vpack.c.b16 %v785, %v782
        %v789 = vpack.c.b16 %v786, %v783
        %v790 = vpack.c.b16 %v787, %v784
        %v795 = vunpack.c.l.b16 %v618
        %v796 = vunpack.c.h.b16 %v618
        %v797 = vunpack.c.l.b16 %v619
        %v798 = vunpack.c.l.b16 %v620
        %v799 = vunpack.c.h.b16 %v620
        %v800 = vunpack.c.l.b16 %v621
        %v801 = vpack.c.b16 %v798, %v795
        %v802 = vpack.c.b16 %v799, %v796
        %v803 = vpack.c.b16 %v800, %v797
        %804 = vrot.lane.b32.xlu0 %v801, 127
        %v805 = vpop.permute.xlu0 %804
        %806 = vrot.lane.b32.xlu0 %v802, 127
        %v807 = vpop.permute.xlu0 %806
        %808 = vrot.lane.b32.xlu0 %v803, 127
        %v809 = vpop.permute.xlu0 %808
        %v810 = vsel %vm683, %v805, %v807
        %v811 = vsel %vm683, %v807, %v809
        %v816 = vunpack.c.l.b16 %v676
        %v817 = vunpack.c.h.b16 %v676
        %v818 = vunpack.c.l.b16 %v677
        %v819 = vunpack.c.l.b16 %v678
        %v820 = vunpack.c.h.b16 %v678
        %v821 = vunpack.c.l.b16 %v679
        %v822 = vpack.c.b16 %v819, %v816
        %v823 = vpack.c.b16 %v820, %v817
        %v824 = vpack.c.b16 %v821, %v818
        %825 = vrot.lane.b32.xlu0 %v822, 126
        %v826 = vpop.permute.xlu0 %825
        %827 = vrot.lane.b32.xlu0 %v823, 126
        %v828 = vpop.permute.xlu0 %827
        %829 = vrot.lane.b32.xlu0 %v824, 126
        %v830 = vpop.permute.xlu0 %829
        %vm831 = vcmask 1031168
        %v832 = vsel %vm831, %v826, %v828
        %v833 = vsel %vm831, %v828, %v830
        %v838 = vunpack.c.l.b16 %v699
        %v839 = vunpack.c.h.b16 %v699
        %v840 = vunpack.c.l.b16 %v700
        %v841 = vunpack.c.l.b16 %v701
        %v842 = vunpack.c.h.b16 %v701
        %v843 = vunpack.c.l.b16 %v702
        %v844 = vpack.c.b16 %v841, %v838
        %v845 = vpack.c.b16 %v842, %v839
        %v846 = vpack.c.b16 %v843, %v840
        %847 = vrot.lane.b32.xlu0 %v844, 112
        %v848 = vpop.permute.xlu0 %847
        %849 = vrot.lane.b32.xlu0 %v845, 112
        %v850 = vpop.permute.xlu0 %849
        %851 = vrot.lane.b32.xlu0 %v846, 112
        %v852 = vpop.permute.xlu0 %851
        %vm853 = vcmask 916480
        %v854 = vsel %vm853, %v848, %v850
        %v855 = vsel %vm853, %v850, %v852
        %v858 = vunpack.c.l.b16 %v703
        %v859 = vunpack.c.h.b16 %v703
        %v860 = vunpack.c.l.b16 %v704
        %v861 = vunpack.c.h.b16 %v704
        %v862 = vpack.c.b16 %v860, %v858
        %v863 = vpack.c.b16 %v861, %v859
        %864 = vrot.lane.b32.xlu0 %v862, 111
        %v865 = vpop.permute.xlu0 %864
        %866 = vrot.lane.b32.xlu0 %v863, 111
        %v867 = vpop.permute.xlu0 %866
        %v868 = vsel %vm631, %v865, %v867
        %v873 = vunpack.c.l.b16 %v728
        %v874 = vunpack.c.h.b16 %v728
        %v875 = vunpack.c.l.b16 %v729
        %v876 = vunpack.c.l.b16 %v730
        %v877 = vunpack.c.h.b16 %v730
        %v878 = vunpack.c.l.b16 %v731
        %v879 = vpack.c.b16 %v876, %v873
        %v880 = vpack.c.b16 %v877, %v874
        %v881 = vpack.c.b16 %v878, %v875
        %882 = vrot.lane.b32.xlu0 %v879, 110
        %v883 = vpop.permute.xlu0 %882
        %884 = vrot.lane.b32.xlu0 %v880, 110
        %v885 = vpop.permute.xlu0 %884
        %886 = vrot.lane.b32.xlu0 %v881, 110
        %v887 = vpop.permute.xlu0 %886
        %vm888 = vcmask 900096
        %v889 = vsel %vm888, %v883, %v885
        %v890 = vsel %vm888, %v885, %v887
        %v895 = vunpack.c.l.b16 %v751
        %v896 = vunpack.c.h.b16 %v751
        %v897 = vunpack.c.l.b16 %v752
        %v898 = vunpack.c.l.b16 %v753
        %v899 = vunpack.c.h.b16 %v753
        %v900 = vunpack.c.l.b16 %v754
        %v901 = vpack.c.b16 %v898, %v895
        %v902 = vpack.c.b16 %v899, %v896
        %v903 = vpack.c.b16 %v900, %v897
        %904 = vrot.lane.b32.xlu0 %v901, 96
        %v905 = vpop.permute.xlu0 %904
        %906 = vrot.lane.b32.xlu0 %v902, 96
        %v907 = vpop.permute.xlu0 %906
        %908 = vrot.lane.b32.xlu0 %v903, 96
        %v909 = vpop.permute.xlu0 %908
        %vm910 = vcmask 785408
        %v911 = vsel %vm910, %v905, %v907
        %v912 = vsel %vm910, %v907, %v909
        %v917 = vunpack.c.l.b16 %v705
        %v918 = vunpack.c.h.b16 %v705
        %v919 = vunpack.c.l.b16 %v706
        %v920 = vunpack.c.l.b16 %v707
        %v921 = vunpack.c.h.b16 %v707
        %v922 = vunpack.c.l.b16 %v708
        %v923 = vpack.c.b16 %v920, %v917
        %v924 = vpack.c.b16 %v921, %v918
        %v925 = vpack.c.b16 %v922, %v919
        %926 = vrot.lane.b32.xlu0 %v923, 95
        %v927 = vpop.permute.xlu0 %926
        %928 = vrot.lane.b32.xlu0 %v924, 95
        %v929 = vpop.permute.xlu0 %928
        %930 = vrot.lane.b32.xlu0 %v925, 95
        %v931 = vpop.permute.xlu0 %930
        %vm932 = vcmask 777216
        %v933 = vsel %vm932, %v927, %v929
        %v934 = vsel %vm932, %v929, %v931
        %v939 = vunpack.c.l.b16 %v774
        %v940 = vunpack.c.h.b16 %v774
        %v941 = vunpack.c.l.b16 %v775
        %v942 = vunpack.c.l.b16 %v776
        %v943 = vunpack.c.h.b16 %v776
        %v944 = vunpack.c.l.b16 %v777
        %v945 = vpack.c.b16 %v942, %v939
        %v946 = vpack.c.b16 %v943, %v940
        %v947 = vpack.c.b16 %v944, %v941
        %948 = vrot.lane.b32.xlu0 %v945, 94
        %v949 = vpop.permute.xlu0 %948
        %950 = vrot.lane.b32.xlu0 %v946, 94
        %v951 = vpop.permute.xlu0 %950
        %952 = vrot.lane.b32.xlu0 %v947, 94
        %v953 = vpop.permute.xlu0 %952
        %vm954 = vcmask 769024
        %v955 = vsel %vm954, %v949, %v951
        %v956 = vsel %vm954, %v951, %v953
        %v957 = vld [vmem:[%s6] sm:$0x3]
        %v958 = vld [vmem:[%s7] sm:$0x3]
        %960 = vset.pattern.permute.xlu0 0
        %961 = vperm.xlu0 %960, %v958
        %v962 = vpop.permute.xlu0 %961
        %965 = vst [vmem:[#allocation1] ss:$9 sm:$0xff] %v957
        %v966 = vld [vmem:[#allocation1] sm:$0xff]
        %v967 = vld [vmem:[#allocation1 + $0x9] sm:$0xff]
        %969 = vrot.lane.b32.xlu0 %v788, 17
        %v970 = vpop.permute.xlu0 %969
        %971 = vrot.lane.b32.xlu0 %v789, 17
        %v972 = vpop.permute.xlu0 %971
        %973 = vrot.lane.b32.xlu0 %v790, 17
        %v974 = vpop.permute.xlu0 %973
        %975 = vrot.lane.b32.xlu0 %v810, 17
        %v976 = vpop.permute.xlu0 %975
        %977 = vrot.lane.b32.xlu0 %v811, 17
        %v978 = vpop.permute.xlu0 %977
        %979 = vrot.lane.b32.xlu0 %v809, 17
        %v980 = vpop.permute.xlu0 %979
        %981 = vrot.lane.b32.xlu0 %v832, 17
        %v982 = vpop.permute.xlu0 %981
        %983 = vrot.lane.b32.xlu0 %v833, 17
        %v984 = vpop.permute.xlu0 %983
        %985 = vrot.lane.b32.xlu0 %v830, 17
        %v986 = vpop.permute.xlu0 %985
        %987 = vrot.lane.b32.xlu0 %v854, 17
        %v988 = vpop.permute.xlu0 %987
        %989 = vrot.lane.b32.xlu0 %v855, 17
        %v990 = vpop.permute.xlu0 %989
        %991 = vrot.lane.b32.xlu0 %v852, 17
        %v992 = vpop.permute.xlu0 %991
        %993 = vrot.lane.b32.xlu0 %v865, 17
        %v994 = vpop.permute.xlu0 %993
        %995 = vrot.lane.b32.xlu0 %v868, 17
        %v996 = vpop.permute.xlu0 %995
        %997 = vrot.lane.b32.xlu0 %v867, 17
        %v998 = vpop.permute.xlu0 %997
        %999 = vrot.lane.b32.xlu0 %v883, 17
        %v1000 = vpop.permute.xlu0 %999
        %1001 = vrot.lane.b32.xlu0 %v889, 17
        %v1002 = vpop.permute.xlu0 %1001
        %1003 = vrot.lane.b32.xlu0 %v890, 17
        %v1004 = vpop.permute.xlu0 %1003
        %1005 = vrot.lane.b32.xlu0 %v905, 17
        %v1006 = vpop.permute.xlu0 %1005
        %1007 = vrot.lane.b32.xlu0 %v911, 17
        %v1008 = vpop.permute.xlu0 %1007
        %1009 = vrot.lane.b32.xlu0 %v912, 17
        %v1010 = vpop.permute.xlu0 %1009
        %1011 = vrot.lane.b32.xlu0 %v927, 17
        %v1012 = vpop.permute.xlu0 %1011
        %1013 = vrot.lane.b32.xlu0 %v933, 17
        %v1014 = vpop.permute.xlu0 %1013
        %1015 = vrot.lane.b32.xlu0 %v934, 17
        %v1016 = vpop.permute.xlu0 %1015
        %1017 = vrot.lane.b32.xlu0 %v949, 17
        %v1018 = vpop.permute.xlu0 %1017
        %1019 = vrot.lane.b32.xlu0 %v955, 17
        %v1020 = vpop.permute.xlu0 %1019
        %1021 = vrot.lane.b32.xlu0 %v956, 17
        %v1022 = vpop.permute.xlu0 %1021
        %v1023 = vsel %vm758, %v970, %v972
        %v1024 = vsel %vm758, %v972, %v974
        %v1025 = vsel %vm758, %v976, %v978
        %v1026 = vsel %vm758, %v978, %v980
        %v1027 = vsel %vm758, %v982, %v984
        %v1028 = vsel %vm758, %v984, %v986
        %v1029 = vsel %vm758, %v988, %v990
        %v1030 = vsel %vm758, %v990, %v992
        %v1031 = vsel %vm758, %v994, %v996
        %v1032 = vsel %vm758, %v996, %v998
        %v1033 = vsel %vm758, %v1000, %v1002
        %v1034 = vsel %vm758, %v1002, %v1004
        %v1035 = vsel %vm758, %v1006, %v1008
        %v1036 = vsel %vm758, %v1008, %v1010
        %v1037 = vsel %vm758, %v1012, %v1014
        %v1038 = vsel %vm758, %v1014, %v1016
        %v1039 = vsel %vm758, %v1018, %v1020
        %v1040 = vsel %vm758, %v1020, %v1022
        %vm1059 = vcmask 130048
        %v1060 = vsel %vm1059, %v967, 0
        %1062 = vmatpush.bf16.msra.mxu0 %v1037
        %1063 = vmatpush.bf16.msra.mxu0 %v1035
        %1064 = vmatpush.bf16.msra.mxu0 %v1033
        %1065 = vmatpush.bf16.msra.mxu0 %v1031
        %1066 = vmatpush.bf16.msra.mxu0 %v1029
        %1067 = vmatpush.bf16.msra.mxu0 %v1027
        %1068 = vmatpush.bf16.msra.mxu0 %v1025
        %1069 = vmatpush.bf16.msra.mxu0 %v1023
        %1070 = vmatmul.bf16.gmra.mxu0 %v966
        %v1071 = vpop.f32.mrf.mxu0
        %v1072 = vadd.f32 %v962, %v1071
        %v1073 = vpop.f32.mrf.mxu0
        %1074 = vdwg.mxu0
        %1075 = vmatpush.bf16.msra.mxu0 0
        %1076 = vmatpush.bf16.msra.mxu0 0
        %1077 = vmatpush.bf16.msra.mxu0 0
        %1078 = vmatpush.bf16.msra.mxu0 0
        %1079 = vmatpush.bf16.msra.mxu0 0
        %1080 = vmatpush.bf16.msra.mxu0 0
        %1081 = vmatpush.bf16.msra.mxu0 0
        %1082 = vmatpush.bf16.msra.mxu0 %v1039
        %1083 = vmatmul.bf16.gmra.mxu0 %v1060
        %v1084 = vpop.f32.mrf.mxu0
        %v1085 = vadd.f32 %v1072, %v1084
        %v1086 = vpop.f32.mrf.mxu0
        %1087 = vdwg.mxu0
        %1088 = vmatpush.bf16.msra.mxu0 %v1038
        %1089 = vmatpush.bf16.msra.mxu0 %v1036
        %1090 = vmatpush.bf16.msra.mxu0 %v1034
        %1091 = vmatpush.bf16.msra.mxu0 %v1032
        %1092 = vmatpush.bf16.msra.mxu0 %v1030
        %1093 = vmatpush.bf16.msra.mxu0 %v1028
        %1094 = vmatpush.bf16.msra.mxu0 %v1026
        %1095 = vmatpush.bf16.msra.mxu0 %v1024
        %1096 = vmatmul.bf16.gmra.mxu0 %v966
        %v1097 = vpop.f32.mrf.mxu0
        %v1098 = vadd.f32 %v962, %v1097
        %v1099 = vpop.f32.mrf.mxu0
        %1100 = vdwg.mxu0
        %1101 = vmatpush.bf16.msra.mxu0 0
        %1102 = vmatpush.bf16.msra.mxu0 0
        %1103 = vmatpush.bf16.msra.mxu0 0
        %1104 = vmatpush.bf16.msra.mxu0 0
        %1105 = vmatpush.bf16.msra.mxu0 0
        %1106 = vmatpush.bf16.msra.mxu0 0
        %1107 = vmatpush.bf16.msra.mxu0 0
        %1108 = vmatpush.bf16.msra.mxu0 %v1040
        %1109 = vmatmul.bf16.gmra.mxu0 %v1060
        %v1110 = vpop.f32.mrf.mxu0
        %v1111 = vadd.f32 %v1098, %v1110
        %v1112 = vpop.f32.mrf.mxu0
        %1113 = vdwg.mxu0
        %v1114 = vmax.f32 %v1085, 0.0
        %v1115 = vmax.f32 %v1111, 0.0
        %v1118 = vrot.slane %v1115, 6
        %vm1119 = vcmask 1041408
        %v1120 = vsel %vm1119, %v1114, %v1118
        %1122 = vst [vmem:[%s298] sm:$0xf] %v1120
        %s1123 = sand.u32 %s203, 1
        %s1124 = scalar_lea.sflag [#allocation4], %s1123
        %s1125 = sand.u32 %s203, 1
        %s1126 = smul.addr %s1125, 4
        %s1127 = scalar_lea.vmem [#allocation3], %s1126
        // Predicated region
        $region53: #{tpu_custom_call.1} parent=51 // pred_check
          %p1128 = pneg %p213
        $region54: #{tpu_custom_call.1} parent=51 // pred_check_branch
          %1130 = sbr.rel (%p1128) target = $region56
        $region55: #{tpu_custom_call.1} parent=51 // pred_region
          %1132 = vsyncadd %s1124, 0
          %s1133 = smul.addr %s22, 2
          %s1134 = smul.addr %s1133, 2
          %s1135 = scalar_lea.hbm %s8, %s1134
          %s1137 = sshll.u32 %s1127, 4
          %s1138 = int_to_ptr.vmem [resolvable:$true] %s1137
          %s1139 = sshll.u32 %s1135, 4
          %s1140 = int_to_ptr.hbm [resolvable:$true] %s1139
          %1142 = dma.vmem_to_hbm [thread:$0]  %s1138, 64, %s1140, %s1124
        $region56: #{tpu_custom_call.1} parent=51 // pred_fallthru
          _
      $region52: #{tpu_custom_call.1} parent=5 // pred_fallthru
        _
      %p1143 = scmp.le.s32.totalorder 2, %s17
      // Predicated region
      $region57: #{tpu_custom_call.1} parent=5 // pred_check
        %p1144 = pneg %p1143
      $region58: #{tpu_custom_call.1} parent=5 // pred_check_branch
        %1146 = sbr.rel (%p1144) target = $region60
      $region59: #{tpu_custom_call.1} parent=5 // pred_region
        %s1147 = ssub.s32 %s17, 2
        // Predicated region
        $region61: #{tpu_custom_call.1} parent=59 // pred_check
          %p1148 = pneg %p219
        $region62: #{tpu_custom_call.1} parent=59 // pred_check_branch
          %1150 = sbr.rel (%p1148) target = $region64
        $region63: #{tpu_custom_call.1} parent=59 // pred_region
          %s1151 = sand.u32 %s204, 1
          %s1152 = scalar_lea.sflag [#allocation4], %s1151
          %s1153 = sand.u32 %s204, 1
          %s1154 = smul.addr %s1153, 4
          %s1155 = scalar_lea.vmem [#allocation3], %s1154
          %1157 = dma.done %s1152, 64
        $region64: #{tpu_custom_call.1} parent=59 // pred_fallthru
          _
      $region60: #{tpu_custom_call.1} parent=5 // pred_fallthru
        _
    $region6: #{tpu_custom_call.1} parent=1 // loop_footer
      %s21 = sadd.s32 1, %s17
    $region7: #{tpu_custom_call.1} parent=1 // loop_footer_branch
      %16 = sbr.rel target = $region3
    $region8: #{tpu_custom_call.1} parent=1 // loop_exit
      _
    %1158 = vsyncpa [#allocation4], 1
    %s1159 = scalar_lea.sflag [#allocation4], 1
    %1160 = vsyncpa %s1159, 1

</llo_original>
